<compile_context>
chip_gen: v6e
topology: v6e:2x2x1
jax: 0.10.0
libtpu: 0.0.40
codegen_flags: <defaults>
</compile_context>

<pallas_src>
import jax
import jax.numpy as jnp
import numpy as np
from jax.experimental import pallas as pl
from jax.experimental.pallas import tpu as pltpu

LANE = 128          # TPU lane width: last-dim store granularity
NEG_BIG = -1e30     # bias for padding classes -> exp underflows to exactly 0


def _round_up(a, b):
    return ((a + b - 1) // b) * b


def _log_softmax_rows(z):
    # log_softmax along the last axis (PyTorch nn.LogSoftmax default dim=1 for 2D).
    # Single exp; max/sum go to XLU, exp/log to EUP -> overlaps MXU work.
    m = jnp.max(z, axis=-1, keepdims=True)
    e = jnp.exp(z - m)
    s = jnp.sum(e, axis=-1, keepdims=True)
    return (z - m) - jnp.log(s)


def mlfc_kernel(x_ref,
                w0_ref, b0_ref,
                w1_ref, b1_ref,
                w2_ref, b2_ref,
                w3_ref, b3_ref,
                out_ref):
    """Fused 4x (Linear -> LogSoftmax) on one (TM, input_size) row tile.

    Matmuls run on the MXU with f32 accumulation; bias add + log-softmax in f32.
    Activations are cast to the weight dtype (f32 or bf16) before each dot.
    """

    def lin_lsm(h, w_ref, b_ref):
        z = jnp.dot(h.astype(w_ref.dtype), w_ref[...],
                    preferred_element_type=jnp.float32)
        z = z + b_ref[...]                     # (1, out) broadcast, f32
        return _log_softmax_rows(z)            # f32

    h = lin_lsm(x_ref[...], w0_ref, b0_ref)
    h = lin_lsm(h, w1_ref, b1_ref)
    h = lin_lsm(h, w2_ref, b2_ref)
    out_ref[...] = lin_lsm(h, w3_ref, b3_ref).astype(out_ref.dtype)


def init_params(key, input_size, hidden_input, num_classes):
    """Deterministic nn.Linear-style init: U(-1/sqrt(fan_in), 1/sqrt(fan_in)).
    Weights stored transposed as (in, out); biases as (1, out)."""
    dims = [input_size] + list(hidden_input) + [num_classes]
    params = []
    for i in range(len(dims) - 1):
        fan_in, fan_out = dims[i], dims[i + 1]
        key, kw, kb = jax.random.split(key, 3)
        bound = 1.0 / np.sqrt(fan_in)
        w = jax.random.uniform(kw, (fan_in, fan_out), jnp.float32, -bound, bound)
        b = jax.random.uniform(kb, (1, fan_out), jnp.float32, -bound, bound)
        params.append((w, b))
    return params


def multilayer_fc_forward(x, params, num_classes, *,
                          compute_dtype=jnp.float32, block_m=512):
    """x: NCHW tensor. Returns (N, num_classes) f32 log-probabilities.

    compute_dtype: dtype of activations/weights fed to the MXU (f32 or bf16);
                   accumulation and log-softmax are always f32.
    block_m:       batch-row tile per grid step (multiple of 8; 512 default).
    """
    N = x.shape[0]
    x_flat = x.reshape(N, -1).astype(compute_dtype)      # nn.Flatten / flatten(x)
    input_size = x_flat.shape[1]

    # --- lane-dense output: pad the last layer to a multiple of 128 columns ---
    out_padded = _round_up(max(num_classes, LANE), LANE)
    prepped = []
    for li, (w, b) in enumerate(params):
        if li == len(params) - 1 and w.shape[1] < out_padded:
            pad = out_padded - w.shape[1]
            w = jnp.pad(w, ((0, 0), (0, pad)))                              # zero weights
            b = jnp.pad(b, ((0, 0), (0, pad)), constant_values=NEG_BIG)     # -inf-ish bias
        prepped.append((w.astype(compute_dtype), b.astype(jnp.float32)))

    # --- batch tiling: TM rows per grid step, pad N up to a multiple of TM ---
    TM = min(block_m, _round_up(N, 8))
    TM = _round_up(TM, 8)
    N_pad = _round_up(N, TM)
    if N_pad != N:
        x_flat = jnp.pad(x_flat, ((0, N_pad - N), (0, 0)))
    grid = (N_pad // TM,)

    flat_args = [x_flat]
    in_specs = [pl.BlockSpec((TM, input_size), lambda i: (i, 0))]
    for w, b in prepped:
        flat_args += [w, b]
        # full-array blocks, constant index_map -> weights stay VMEM-resident
        in_specs += [pl.BlockSpec(w.shape, lambda i: (0, 0)),
                     pl.BlockSpec(b.shape, lambda i: (0, 0))]

    out = pl.pallas_call(
        mlfc_kernel,
        out_shape=jax.ShapeDtypeStruct((N_pad, out_padded), jnp.float32),
        grid=grid,
        in_specs=in_specs,
        out_specs=pl.BlockSpec((TM, out_padded), lambda i: (i, 0)),
        compiler_params=pltpu.CompilerParams(
            dimension_semantics=("parallel",)),   # megacore-shardable batch axis
    )(*flat_args)

    return out[:N, :num_classes]


def reference_forward(x, params):
    h = x.reshape(x.shape[0], -1)
    for w, b in params:
        z = h @ w + b
        h = jax.nn.log_softmax(z, axis=-1)
    return h


if __name__ == "__main__":
    # Small shapes consistent with the module: NCHW image input.
    N, C, H, W = 2, 4, 16, 16
    input_size = C * H * W          # 1024
    hidden_input = [128, 64, 32]
    num_classes = 10

    key = jax.random.PRNGKey(0)
    key, kx = jax.random.split(key)
    x = jax.random.normal(kx, (N, C, H, W), dtype=jnp.float32)
    params = init_params(key, input_size, hidden_input, num_classes)

    ref = reference_forward(x, params)

    # 1) f32 path (default), tiny batch: tight tolerance vs f32 reference.
    out_f32 = jax.block_until_ready(
        multilayer_fc_forward(x, params, num_classes, compute_dtype=jnp.float32))
    np.testing.assert_allclose(np.asarray(out_f32), np.asarray(ref),
                               rtol=1e-5, atol=1e-5)

    # 2) bf16 compute path (halves HBM traffic; f32 accumulation): relaxed tolerance.
    out_bf16 = jax.block_until_ready(
        multilayer_fc_forward(x, params, num_classes, compute_dtype=jnp.bfloat16))
    np.testing.assert_allclose(np.asarray(out_bf16), np.asarray(ref),
                               rtol=1e-1, atol=1e-1)

    # 3) Exercise the batch grid + row-padding path (grid > 1, N not a tile multiple).
    key, kx2 = jax.random.split(key)
    x_big = jax.random.normal(kx2, (100, C, H, W), dtype=jnp.float32)
    out_big = jax.block_until_ready(
        multilayer_fc_forward(x_big, params, num_classes,
                              compute_dtype=jnp.float32, block_m=64))
    ref_big = reference_forward(x_big, params)
    np.testing.assert_allclose(np.asarray(out_big), np.asarray(ref_big),
                               rtol=1e-5, atol=1e-5)

    print("KERNEL_OK")
</pallas_src>

<mosaic_0001>
module attributes {stable_mosaic.version = 11 : i64} {
  func.func @mlfc_kernel(%arg0: i32, %arg1: memref<8x1024xf32, #tpu.memory_space<vmem>>, %arg2: memref<1024x128xf32, #tpu.memory_space<vmem>>, %arg3: memref<1x128xf32, #tpu.memory_space<vmem>>, %arg4: memref<128x64xf32, #tpu.memory_space<vmem>>, %arg5: memref<1x64xf32, #tpu.memory_space<vmem>>, %arg6: memref<64x32xf32, #tpu.memory_space<vmem>>, %arg7: memref<1x32xf32, #tpu.memory_space<vmem>>, %arg8: memref<32x128xf32, #tpu.memory_space<vmem>>, %arg9: memref<1x128xf32, #tpu.memory_space<vmem>>, %arg10: memref<8x128xf32, #tpu.memory_space<vmem>>) attributes {dimension_semantics = [#tpu.dimension_semantics<parallel>], iteration_bounds = array<i64: 1>, scalar_prefetch = 0 : i64, scratch_operands = 0 : i64, tpu.core_type = #tpu.core_type<tc>, window_params = [{transform_indices = @transform_0, window_bounds = array<i64: 8, 1024>}, {pipeline_mode = #tpu.pipeline_mode<synchronous>, transform_indices = @transform_1, window_bounds = array<i64: 1024, 128>}, {pipeline_mode = #tpu.pipeline_mode<synchronous>, transform_indices = @transform_2, window_bounds = array<i64: 1, 128>}, {pipeline_mode = #tpu.pipeline_mode<synchronous>, transform_indices = @transform_3, window_bounds = array<i64: 128, 64>}, {pipeline_mode = #tpu.pipeline_mode<synchronous>, transform_indices = @transform_4, window_bounds = array<i64: 1, 64>}, {pipeline_mode = #tpu.pipeline_mode<synchronous>, transform_indices = @transform_5, window_bounds = array<i64: 64, 32>}, {pipeline_mode = #tpu.pipeline_mode<synchronous>, transform_indices = @transform_6, window_bounds = array<i64: 1, 32>}, {pipeline_mode = #tpu.pipeline_mode<synchronous>, transform_indices = @transform_7, window_bounds = array<i64: 32, 128>}, {pipeline_mode = #tpu.pipeline_mode<synchronous>, transform_indices = @transform_8, window_bounds = array<i64: 1, 128>}, {transform_indices = @transform_9, window_bounds = array<i64: 8, 128>}]} {
    %c0 = arith.constant 0 : index
    %c0_0 = arith.constant 0 : index
    %0 = vector.load %arg1[%c0, %c0_0] : memref<8x1024xf32, #tpu.memory_space<vmem>>, vector<8x1024xf32>
    %c0_1 = arith.constant 0 : index
    %c0_2 = arith.constant 0 : index
    %1 = vector.load %arg2[%c0_1, %c0_2] : memref<1024x128xf32, #tpu.memory_space<vmem>>, vector<1024x128xf32>
    %cst = arith.constant dense<0.000000e+00> : vector<8x128xf32>
    %2 = tpu.matmul %0, %1, %cst {dimension_numbers = #tpu.dot_dimension_numbers<[1], [0], [0], [1], [0, 0, 1, 1], [], []>} : vector<8x1024xf32>, vector<1024x128xf32>, vector<8x128xf32> -> vector<8x128xf32>
    %c0_3 = arith.constant 0 : index
    %c0_4 = arith.constant 0 : index
    %3 = vector.load %arg3[%c0_3, %c0_4] : memref<1x128xf32, #tpu.memory_space<vmem>>, vector<1x128xf32>
    %4 = vector.broadcast %3 : vector<1x128xf32> to vector<8x128xf32>
    %5 = arith.addf %2, %4 : vector<8x128xf32>
    %cst_5 = arith.constant dense<0xFF800000> : vector<8xf32>
    %6 = vector.multi_reduction <maximumf>, %5, %cst_5 [1] : vector<8x128xf32> to vector<8xf32>
    %7 = vector.shape_cast %6 : vector<8xf32> to vector<8x1xf32>
    %8 = vector.broadcast %7 : vector<8x1xf32> to vector<8x128xf32>
    %9 = arith.subf %5, %8 : vector<8x128xf32>
    %10 = math.exp %9 : vector<8x128xf32>
    %cst_6 = arith.constant dense<0.000000e+00> : vector<8xf32>
    %11 = vector.multi_reduction <add>, %10, %cst_6 [1] : vector<8x128xf32> to vector<8xf32>
    %12 = vector.shape_cast %11 : vector<8xf32> to vector<8x1xf32>
    %13 = vector.broadcast %7 : vector<8x1xf32> to vector<8x128xf32>
    %14 = arith.subf %5, %13 : vector<8x128xf32>
    %15 = math.log %12 : vector<8x1xf32>
    %16 = vector.broadcast %15 : vector<8x1xf32> to vector<8x128xf32>
    %17 = arith.subf %14, %16 : vector<8x128xf32>
    %c0_7 = arith.constant 0 : index
    %c0_8 = arith.constant 0 : index
    %18 = vector.load %arg4[%c0_7, %c0_8] : memref<128x64xf32, #tpu.memory_space<vmem>>, vector<128x64xf32>
    %cst_9 = arith.constant dense<0.000000e+00> : vector<8x64xf32>
    %19 = tpu.matmul %17, %18, %cst_9 {dimension_numbers = #tpu.dot_dimension_numbers<[1], [0], [0], [1], [0, 0, 1, 1], [], []>} : vector<8x128xf32>, vector<128x64xf32>, vector<8x64xf32> -> vector<8x64xf32>
    %c0_10 = arith.constant 0 : index
    %c0_11 = arith.constant 0 : index
    %20 = vector.load %arg5[%c0_10, %c0_11] : memref<1x64xf32, #tpu.memory_space<vmem>>, vector<1x64xf32>
    %21 = vector.broadcast %20 : vector<1x64xf32> to vector<8x64xf32>
    %22 = arith.addf %19, %21 : vector<8x64xf32>
    %cst_12 = arith.constant dense<0xFF800000> : vector<8xf32>
    %23 = vector.multi_reduction <maximumf>, %22, %cst_12 [1] : vector<8x64xf32> to vector<8xf32>
    %24 = vector.shape_cast %23 : vector<8xf32> to vector<8x1xf32>
    %25 = vector.broadcast %24 : vector<8x1xf32> to vector<8x64xf32>
    %26 = arith.subf %22, %25 : vector<8x64xf32>
    %27 = math.exp %26 : vector<8x64xf32>
    %cst_13 = arith.constant dense<0.000000e+00> : vector<8xf32>
    %28 = vector.multi_reduction <add>, %27, %cst_13 [1] : vector<8x64xf32> to vector<8xf32>
    %29 = vector.shape_cast %28 : vector<8xf32> to vector<8x1xf32>
    %30 = vector.broadcast %24 : vector<8x1xf32> to vector<8x64xf32>
    %31 = arith.subf %22, %30 : vector<8x64xf32>
    %32 = math.log %29 : vector<8x1xf32>
    %33 = vector.broadcast %32 : vector<8x1xf32> to vector<8x64xf32>
    %34 = arith.subf %31, %33 : vector<8x64xf32>
    %c0_14 = arith.constant 0 : index
    %c0_15 = arith.constant 0 : index
    %35 = vector.load %arg6[%c0_14, %c0_15] : memref<64x32xf32, #tpu.memory_space<vmem>>, vector<64x32xf32>
    %cst_16 = arith.constant dense<0.000000e+00> : vector<8x32xf32>
    %36 = tpu.matmul %34, %35, %cst_16 {dimension_numbers = #tpu.dot_dimension_numbers<[1], [0], [0], [1], [0, 0, 1, 1], [], []>} : vector<8x64xf32>, vector<64x32xf32>, vector<8x32xf32> -> vector<8x32xf32>
    %c0_17 = arith.constant 0 : index
    %c0_18 = arith.constant 0 : index
    %37 = vector.load %arg7[%c0_17, %c0_18] : memref<1x32xf32, #tpu.memory_space<vmem>>, vector<1x32xf32>
    %38 = vector.broadcast %37 : vector<1x32xf32> to vector<8x32xf32>
    %39 = arith.addf %36, %38 : vector<8x32xf32>
    %cst_19 = arith.constant dense<0xFF800000> : vector<8xf32>
    %40 = vector.multi_reduction <maximumf>, %39, %cst_19 [1] : vector<8x32xf32> to vector<8xf32>
    %41 = vector.shape_cast %40 : vector<8xf32> to vector<8x1xf32>
    %42 = vector.broadcast %41 : vector<8x1xf32> to vector<8x32xf32>
    %43 = arith.subf %39, %42 : vector<8x32xf32>
    %44 = math.exp %43 : vector<8x32xf32>
    %cst_20 = arith.constant dense<0.000000e+00> : vector<8xf32>
    %45 = vector.multi_reduction <add>, %44, %cst_20 [1] : vector<8x32xf32> to vector<8xf32>
    %46 = vector.shape_cast %45 : vector<8xf32> to vector<8x1xf32>
    %47 = vector.broadcast %41 : vector<8x1xf32> to vector<8x32xf32>
    %48 = arith.subf %39, %47 : vector<8x32xf32>
    %49 = math.log %46 : vector<8x1xf32>
    %50 = vector.broadcast %49 : vector<8x1xf32> to vector<8x32xf32>
    %51 = arith.subf %48, %50 : vector<8x32xf32>
    %c0_21 = arith.constant 0 : index
    %c0_22 = arith.constant 0 : index
    %52 = vector.load %arg8[%c0_21, %c0_22] : memref<32x128xf32, #tpu.memory_space<vmem>>, vector<32x128xf32>
    %cst_23 = arith.constant dense<0.000000e+00> : vector<8x128xf32>
    %53 = tpu.matmul %51, %52, %cst_23 {dimension_numbers = #tpu.dot_dimension_numbers<[1], [0], [0], [1], [0, 0, 1, 1], [], []>} : vector<8x32xf32>, vector<32x128xf32>, vector<8x128xf32> -> vector<8x128xf32>
    %c0_24 = arith.constant 0 : index
    %c0_25 = arith.constant 0 : index
    %54 = vector.load %arg9[%c0_24, %c0_25] : memref<1x128xf32, #tpu.memory_space<vmem>>, vector<1x128xf32>
    %55 = vector.broadcast %54 : vector<1x128xf32> to vector<8x128xf32>
    %56 = arith.addf %53, %55 : vector<8x128xf32>
    %cst_26 = arith.constant dense<0xFF800000> : vector<8xf32>
    %57 = vector.multi_reduction <maximumf>, %56, %cst_26 [1] : vector<8x128xf32> to vector<8xf32>
    %58 = vector.shape_cast %57 : vector<8xf32> to vector<8x1xf32>
    %59 = vector.broadcast %58 : vector<8x1xf32> to vector<8x128xf32>
    %60 = arith.subf %56, %59 : vector<8x128xf32>
    %61 = math.exp %60 : vector<8x128xf32>
    %cst_27 = arith.constant dense<0.000000e+00> : vector<8xf32>
    %62 = vector.multi_reduction <add>, %61, %cst_27 [1] : vector<8x128xf32> to vector<8xf32>
    %63 = vector.shape_cast %62 : vector<8xf32> to vector<8x1xf32>
    %64 = vector.broadcast %58 : vector<8x1xf32> to vector<8x128xf32>
    %65 = arith.subf %56, %64 : vector<8x128xf32>
    %66 = math.log %63 : vector<8x1xf32>
    %67 = vector.broadcast %66 : vector<8x1xf32> to vector<8x128xf32>
    %68 = arith.subf %65, %67 : vector<8x128xf32>
    %c0_28 = arith.constant 0 : index
    %c0_29 = arith.constant 0 : index
    %69 = vector.load %arg10[%c0_28, %c0_29] : memref<8x128xf32, #tpu.memory_space<vmem>>, vector<8x128xf32>
    tpu.vector_store %arg10[%c0_28, %c0_29], %68 {strides = array<i32>} : memref<8x128xf32, #tpu.memory_space<vmem>>, vector<8x128xf32>,
    return
  }
  func.func @transform_0(%arg0: i32) -> (i32, i32) {
    %c0_i32 = arith.constant 0 : i32
    %c0_i32_0 = arith.constant 0 : i32
    return %arg0, %c0_i32 : i32, i32
  }
  func.func @transform_1(%arg0: i32) -> (i32, i32) {
    %c0_i32 = arith.constant 0 : i32
    %c0_i32_0 = arith.constant 0 : i32
    %c0_i32_1 = arith.constant 0 : i32
    return %c0_i32, %c0_i32_0 : i32, i32
  }
  func.func @transform_2(%arg0: i32) -> (i32, i32) {
    %c0_i32 = arith.constant 0 : i32
    %c0_i32_0 = arith.constant 0 : i32
    %c0_i32_1 = arith.constant 0 : i32
    return %c0_i32, %c0_i32_0 : i32, i32
  }
  func.func @transform_3(%arg0: i32) -> (i32, i32) {
    %c0_i32 = arith.constant 0 : i32
    %c0_i32_0 = arith.constant 0 : i32
    %c0_i32_1 = arith.constant 0 : i32
    return %c0_i32, %c0_i32_0 : i32, i32
  }
  func.func @transform_4(%arg0: i32) -> (i32, i32) {
    %c0_i32 = arith.constant 0 : i32
    %c0_i32_0 = arith.constant 0 : i32
    %c0_i32_1 = arith.constant 0 : i32
    return %c0_i32, %c0_i32_0 : i32, i32
  }
  func.func @transform_5(%arg0: i32) -> (i32, i32) {
    %c0_i32 = arith.constant 0 : i32
    %c0_i32_0 = arith.constant 0 : i32
    %c0_i32_1 = arith.constant 0 : i32
    return %c0_i32, %c0_i32_0 : i32, i32
  }
  func.func @transform_6(%arg0: i32) -> (i32, i32) {
    %c0_i32 = arith.constant 0 : i32
    %c0_i32_0 = arith.constant 0 : i32
    %c0_i32_1 = arith.constant 0 : i32
    return %c0_i32, %c0_i32_0 : i32, i32
  }
  func.func @transform_7(%arg0: i32) -> (i32, i32) {
    %c0_i32 = arith.constant 0 : i32
    %c0_i32_0 = arith.constant 0 : i32
    %c0_i32_1 = arith.constant 0 : i32
    return %c0_i32, %c0_i32_0 : i32, i32
  }
  func.func @transform_8(%arg0: i32) -> (i32, i32) {
    %c0_i32 = arith.constant 0 : i32
    %c0_i32_0 = arith.constant 0 : i32
    %c0_i32_1 = arith.constant 0 : i32
    return %c0_i32, %c0_i32_0 : i32, i32
  }
  func.func @transform_9(%arg0: i32) -> (i32, i32) {
    %c0_i32 = arith.constant 0 : i32
    %c0_i32_0 = arith.constant 0 : i32
    return %arg0, %c0_i32 : i32, i32
  }
}

</mosaic_0001>

<llo_original>
// kernel: tpu_custom_call.1
$region0: #{tpu_custom_call.1}
  #allocation0 [shape = 'u32[]', space=smem, size = 0x4, offset = 0x4, fixed_abs, tag = 'smem constant byte address 0x4 - core index']
  #allocation1 [shape = 'u32[144,128]{1,0:T(1,128)}', space=vmem, size = 0x12000, scoped, tag = 'internal scratch']
  %s0 = inlined_call_operand.vmem [shape: f32[8,1024], index: 0, kind: input, shape index: {}]
  %s1 = inlined_call_operand.hbm [shape: f32[1024,128], index: 1, kind: input, shape index: {}]
  %s2 = inlined_call_operand.vmem [shape: f32[1,128], index: 2, kind: input, shape index: {}]
  %s3 = inlined_call_operand.vmem [shape: f32[128,64], index: 3, kind: input, shape index: {}]
  %s4 = inlined_call_operand.vmem [shape: f32[1,64], index: 4, kind: input, shape index: {}]
  %s5 = inlined_call_operand.vmem [shape: f32[64,32], index: 5, kind: input, shape index: {}]
  %s6 = inlined_call_operand.vmem [shape: f32[1,32], index: 6, kind: input, shape index: {}]
  %s7 = inlined_call_operand.vmem [shape: f32[32,128], index: 7, kind: input, shape index: {}]
  %s8 = inlined_call_operand.vmem [shape: f32[1,128], index: 8, kind: input, shape index: {}]
  %s9 = inlined_call_operand.hbm [shape: f32[8,128], index: 9, kind: output, shape index: {}]
  %s10 = sld [smem:[#allocation0]]
  $region50: #{tpu_custom_call.1} parent=0
    _
  %s12 = ssub.s32 1, %s10
  %s13 = scalar_select 0, %s12, %s10
  $region1: #{tpu_custom_call.1} parent=0
    #allocation2 [shape = 'u8[524288]{0}', space=vmem, size = 0x80000, scoped, tag = 'input window, operand 1, single buffered']
    #allocation3 [shape = 's32[1]{0}', space=sflag, size = 0x4, scoped, tag = 'scoped memory for tpu_custom_call.1']
    #allocation4 [shape = 's32[1]{0}', space=sflag, size = 0x4, scoped, tag = 'scoped memory for tpu_custom_call.1']
    #allocation5 [shape = 'u8[4096]{0}', space=vmem, size = 0x1000, scoped, tag = 'output window, operand 0, single buffered']
    %14 = vsyncpa [#allocation3], 0
    %15 = vsyncpa [#allocation4], 0
    // Predicated region
    $region2: #{tpu_custom_call.1} parent=1 // pred_check
      _
    $region3: #{tpu_custom_call.1} parent=1 // pred_check_branch
      %17 = sbr.rel (0) target = $region5
    $region4: #{tpu_custom_call.1} parent=1 // pred_region
      _
    $region5: #{tpu_custom_call.1} parent=1 // pred_fallthru
      _
    // Predicated region
    $region6: #{tpu_custom_call.1} parent=1 // pred_check
      _
    $region7: #{tpu_custom_call.1} parent=1 // pred_check_branch
      %19 = sbr.rel (0) target = $region9
    $region8: #{tpu_custom_call.1} parent=1 // pred_region
      %s21 = ssub.s32 16384, 16384
      %22 = vsyncadd [#allocation3], %s21
      %s23 = sshll.u32 [#allocation2], 4
      %s24 = int_to_ptr.vmem [resolvable:$true] %s23
      %29 = dma.hbm_to_vmem [thread:$0]  %s1, 16384, %s24, [#allocation3], 128, 128, 8
    $region9: #{tpu_custom_call.1} parent=1 // pred_fallthru
      _
    // Predicated region
    $region10: #{tpu_custom_call.1} parent=1 // pred_check
      _
    $region11: #{tpu_custom_call.1} parent=1 // pred_check_branch
      %31 = sbr.rel (0) target = $region13
    $region12: #{tpu_custom_call.1} parent=1 // pred_region
      _
    $region13: #{tpu_custom_call.1} parent=1 // pred_fallthru
      _
    // Predicated region
    $region14: #{tpu_custom_call.1} parent=1 // pred_check
      _
    $region15: #{tpu_custom_call.1} parent=1 // pred_check_branch
      %33 = sbr.rel (0) target = $region17
    $region16: #{tpu_custom_call.1} parent=1 // pred_region
      _
    $region17: #{tpu_custom_call.1} parent=1 // pred_fallthru
      _
    // Predicated region
    $region18: #{tpu_custom_call.1} parent=1 // pred_check
      _
    $region19: #{tpu_custom_call.1} parent=1 // pred_check_branch
      %35 = sbr.rel (0) target = $region21
    $region20: #{tpu_custom_call.1} parent=1 // pred_region
      _
    $region21: #{tpu_custom_call.1} parent=1 // pred_fallthru
      _
    // Predicated region
    $region22: #{tpu_custom_call.1} parent=1 // pred_check
      _
    $region23: #{tpu_custom_call.1} parent=1 // pred_check_branch
      %37 = sbr.rel (0) target = $region25
    $region24: #{tpu_custom_call.1} parent=1 // pred_region
      _
    $region25: #{tpu_custom_call.1} parent=1 // pred_fallthru
      _
    // Predicated region
    $region26: #{tpu_custom_call.1} parent=1 // pred_check
      _
    $region27: #{tpu_custom_call.1} parent=1 // pred_check_branch
      %39 = sbr.rel (0) target = $region29
    $region28: #{tpu_custom_call.1} parent=1 // pred_region
      _
    $region29: #{tpu_custom_call.1} parent=1 // pred_fallthru
      _
    // Predicated region
    $region30: #{tpu_custom_call.1} parent=1 // pred_check
      _
    $region31: #{tpu_custom_call.1} parent=1 // pred_check_branch
      %41 = sbr.rel (0) target = $region33
    $region32: #{tpu_custom_call.1} parent=1 // pred_region
      _
    $region33: #{tpu_custom_call.1} parent=1 // pred_fallthru
      _
    // Predicated region
    $region34: #{tpu_custom_call.1} parent=1 // pred_check
      _
    $region35: #{tpu_custom_call.1} parent=1 // pred_check_branch
      %43 = sbr.rel (0) target = $region37
    $region36: #{tpu_custom_call.1} parent=1 // pred_region
      _
    $region37: #{tpu_custom_call.1} parent=1 // pred_fallthru
      _
    // Predicated region
    $region38: #{tpu_custom_call.1} parent=1 // pred_check
      _
    $region39: #{tpu_custom_call.1} parent=1 // pred_check_branch
      %45 = sbr.rel (0) target = $region41
    $region40: #{tpu_custom_call.1} parent=1 // pred_region
      %46 = dma.done [#allocation3], 16384
    $region41: #{tpu_custom_call.1} parent=1 // pred_fallthru
      _
    %v47 = vld [vmem:[%s0] sm:$0xff]
    %v48 = vld [vmem:[%s0 + $0x8] sm:$0xff]
    %v49 = vld [vmem:[%s0 + $0x10] sm:$0xff]
    %v50 = vld [vmem:[%s0 + $0x18] sm:$0xff]
    %v51 = vld [vmem:[%s0 + $0x20] sm:$0xff]
    %v52 = vld [vmem:[%s0 + $0x28] sm:$0xff]
    %v53 = vld [vmem:[%s0 + $0x30] sm:$0xff]
    %v54 = vld [vmem:[%s0 + $0x38] sm:$0xff]
    %v55 = vld [vmem:[#allocation2] sm:$0xff]
    %v56 = vld [vmem:[#allocation2 + $0x8] sm:$0xff]
    %v57 = vld [vmem:[#allocation2 + $0x10] sm:$0xff]
    %v58 = vld [vmem:[#allocation2 + $0x18] sm:$0xff]
    %v59 = vld [vmem:[#allocation2 + $0x20] sm:$0xff]
    %v60 = vld [vmem:[#allocation2 + $0x28] sm:$0xff]
    %v61 = vld [vmem:[#allocation2 + $0x30] sm:$0xff]
    %v62 = vld [vmem:[#allocation2 + $0x38] sm:$0xff]
    %v63 = vld [vmem:[#allocation2 + $0x40] sm:$0xff]
    %v64 = vld [vmem:[#allocation2 + $0x48] sm:$0xff]
    %v65 = vld [vmem:[#allocation2 + $0x50] sm:$0xff]
    %v66 = vld [vmem:[#allocation2 + $0x58] sm:$0xff]
    %v67 = vld [vmem:[#allocation2 + $0x60] sm:$0xff]
    %v68 = vld [vmem:[#allocation2 + $0x68] sm:$0xff]
    %v69 = vld [vmem:[#allocation2 + $0x70] sm:$0xff]
    %v70 = vld [vmem:[#allocation2 + $0x78] sm:$0xff]
    %v71 = vld [vmem:[#allocation2 + $0x80] sm:$0xff]
    %v72 = vld [vmem:[#allocation2 + $0x88] sm:$0xff]
    %v73 = vld [vmem:[#allocation2 + $0x90] sm:$0xff]
    %v74 = vld [vmem:[#allocation2 + $0x98] sm:$0xff]
    %v75 = vld [vmem:[#allocation2 + $0xa0] sm:$0xff]
    %v76 = vld [vmem:[#allocation2 + $0xa8] sm:$0xff]
    %v77 = vld [vmem:[#allocation2 + $0xb0] sm:$0xff]
    %v78 = vld [vmem:[#allocation2 + $0xb8] sm:$0xff]
    %v79 = vld [vmem:[#allocation2 + $0xc0] sm:$0xff]
    %v80 = vld [vmem:[#allocation2 + $0xc8] sm:$0xff]
    %v81 = vld [vmem:[#allocation2 + $0xd0] sm:$0xff]
    %v82 = vld [vmem:[#allocation2 + $0xd8] sm:$0xff]
    %v83 = vld [vmem:[#allocation2 + $0xe0] sm:$0xff]
    %v84 = vld [vmem:[#allocation2 + $0xe8] sm:$0xff]
    %v85 = vld [vmem:[#allocation2 + $0xf0] sm:$0xff]
    %v86 = vld [vmem:[#allocation2 + $0xf8] sm:$0xff]
    %v87 = vld [vmem:[#allocation2 + $0x100] sm:$0xff]
    %v88 = vld [vmem:[#allocation2 + $0x108] sm:$0xff]
    %v89 = vld [vmem:[#allocation2 + $0x110] sm:$0xff]
    %v90 = vld [vmem:[#allocation2 + $0x118] sm:$0xff]
    %v91 = vld [vmem:[#allocation2 + $0x120] sm:$0xff]
    %v92 = vld [vmem:[#allocation2 + $0x128] sm:$0xff]
    %v93 = vld [vmem:[#allocation2 + $0x130] sm:$0xff]
    %v94 = vld [vmem:[#allocation2 + $0x138] sm:$0xff]
    %v95 = vld [vmem:[#allocation2 + $0x140] sm:$0xff]
    %v96 = vld [vmem:[#allocation2 + $0x148] sm:$0xff]
    %v97 = vld [vmem:[#allocation2 + $0x150] sm:$0xff]
    %v98 = vld [vmem:[#allocation2 + $0x158] sm:$0xff]
    %v99 = vld [vmem:[#allocation2 + $0x160] sm:$0xff]
    %v100 = vld [vmem:[#allocation2 + $0x168] sm:$0xff]
    %v101 = vld [vmem:[#allocation2 + $0x170] sm:$0xff]
    %v102 = vld [vmem:[#allocation2 + $0x178] sm:$0xff]
    %v103 = vld [vmem:[#allocation2 + $0x180] sm:$0xff]
    %v104 = vld [vmem:[#allocation2 + $0x188] sm:$0xff]
    %v105 = vld [vmem:[#allocation2 + $0x190] sm:$0xff]
    %v106 = vld [vmem:[#allocation2 + $0x198] sm:$0xff]
    %v107 = vld [vmem:[#allocation2 + $0x1a0] sm:$0xff]
    %v108 = vld [vmem:[#allocation2 + $0x1a8] sm:$0xff]
    %v109 = vld [vmem:[#allocation2 + $0x1b0] sm:$0xff]
    %v110 = vld [vmem:[#allocation2 + $0x1b8] sm:$0xff]
    %v111 = vld [vmem:[#allocation2 + $0x1c0] sm:$0xff]
    %v112 = vld [vmem:[#allocation2 + $0x1c8] sm:$0xff]
    %v113 = vld [vmem:[#allocation2 + $0x1d0] sm:$0xff]
    %v114 = vld [vmem:[#allocation2 + $0x1d8] sm:$0xff]
    %v115 = vld [vmem:[#allocation2 + $0x1e0] sm:$0xff]
    %v116 = vld [vmem:[#allocation2 + $0x1e8] sm:$0xff]
    %v117 = vld [vmem:[#allocation2 + $0x1f0] sm:$0xff]
    %v118 = vld [vmem:[#allocation2 + $0x1f8] sm:$0xff]
    %v119 = vld [vmem:[#allocation2 + $0x200] sm:$0xff]
    %v120 = vld [vmem:[#allocation2 + $0x208] sm:$0xff]
    %v121 = vld [vmem:[#allocation2 + $0x210] sm:$0xff]
    %v122 = vld [vmem:[#allocation2 + $0x218] sm:$0xff]
    %v123 = vld [vmem:[#allocation2 + $0x220] sm:$0xff]
    %v124 = vld [vmem:[#allocation2 + $0x228] sm:$0xff]
    %v125 = vld [vmem:[#allocation2 + $0x230] sm:$0xff]
    %v126 = vld [vmem:[#allocation2 + $0x238] sm:$0xff]
    %v127 = vld [vmem:[#allocation2 + $0x240] sm:$0xff]
    %v128 = vld [vmem:[#allocation2 + $0x248] sm:$0xff]
    %v129 = vld [vmem:[#allocation2 + $0x250] sm:$0xff]
    %v130 = vld [vmem:[#allocation2 + $0x258] sm:$0xff]
    %v131 = vld [vmem:[#allocation2 + $0x260] sm:$0xff]
    %v132 = vld [vmem:[#allocation2 + $0x268] sm:$0xff]
    %v133 = vld [vmem:[#allocation2 + $0x270] sm:$0xff]
    %v134 = vld [vmem:[#allocation2 + $0x278] sm:$0xff]
    %v135 = vld [vmem:[#allocation2 + $0x280] sm:$0xff]
    %v136 = vld [vmem:[#allocation2 + $0x288] sm:$0xff]
    %v137 = vld [vmem:[#allocation2 + $0x290] sm:$0xff]
    %v138 = vld [vmem:[#allocation2 + $0x298] sm:$0xff]
    %v139 = vld [vmem:[#allocation2 + $0x2a0] sm:$0xff]
    %v140 = vld [vmem:[#allocation2 + $0x2a8] sm:$0xff]
    %v141 = vld [vmem:[#allocation2 + $0x2b0] sm:$0xff]
    %v142 = vld [vmem:[#allocation2 + $0x2b8] sm:$0xff]
    %v143 = vld [vmem:[#allocation2 + $0x2c0] sm:$0xff]
    %v144 = vld [vmem:[#allocation2 + $0x2c8] sm:$0xff]
    %v145 = vld [vmem:[#allocation2 + $0x2d0] sm:$0xff]
    %v146 = vld [vmem:[#allocation2 + $0x2d8] sm:$0xff]
    %v147 = vld [vmem:[#allocation2 + $0x2e0] sm:$0xff]
    %v148 = vld [vmem:[#allocation2 + $0x2e8] sm:$0xff]
    %v149 = vld [vmem:[#allocation2 + $0x2f0] sm:$0xff]
    %v150 = vld [vmem:[#allocation2 + $0x2f8] sm:$0xff]
    %v151 = vld [vmem:[#allocation2 + $0x300] sm:$0xff]
    %v152 = vld [vmem:[#allocation2 + $0x308] sm:$0xff]
    %v153 = vld [vmem:[#allocation2 + $0x310] sm:$0xff]
    %v154 = vld [vmem:[#allocation2 + $0x318] sm:$0xff]
    %v155 = vld [vmem:[#allocation2 + $0x320] sm:$0xff]
    %v156 = vld [vmem:[#allocation2 + $0x328] sm:$0xff]
    %v157 = vld [vmem:[#allocation2 + $0x330] sm:$0xff]
    %v158 = vld [vmem:[#allocation2 + $0x338] sm:$0xff]
    %v159 = vld [vmem:[#allocation2 + $0x340] sm:$0xff]
    %v160 = vld [vmem:[#allocation2 + $0x348] sm:$0xff]
    %v161 = vld [vmem:[#allocation2 + $0x350] sm:$0xff]
    %v162 = vld [vmem:[#allocation2 + $0x358] sm:$0xff]
    %v163 = vld [vmem:[#allocation2 + $0x360] sm:$0xff]
    %v164 = vld [vmem:[#allocation2 + $0x368] sm:$0xff]
    %v165 = vld [vmem:[#allocation2 + $0x370] sm:$0xff]
    %v166 = vld [vmem:[#allocation2 + $0x378] sm:$0xff]
    %v167 = vld [vmem:[#allocation2 + $0x380] sm:$0xff]
    %v168 = vld [vmem:[#allocation2 + $0x388] sm:$0xff]
    %v169 = vld [vmem:[#allocation2 + $0x390] sm:$0xff]
    %v170 = vld [vmem:[#allocation2 + $0x398] sm:$0xff]
    %v171 = vld [vmem:[#allocation2 + $0x3a0] sm:$0xff]
    %v172 = vld [vmem:[#allocation2 + $0x3a8] sm:$0xff]
    %v173 = vld [vmem:[#allocation2 + $0x3b0] sm:$0xff]
    %v174 = vld [vmem:[#allocation2 + $0x3b8] sm:$0xff]
    %v175 = vld [vmem:[#allocation2 + $0x3c0] sm:$0xff]
    %v176 = vld [vmem:[#allocation2 + $0x3c8] sm:$0xff]
    %v177 = vld [vmem:[#allocation2 + $0x3d0] sm:$0xff]
    %v178 = vld [vmem:[#allocation2 + $0x3d8] sm:$0xff]
    %v179 = vld [vmem:[#allocation2 + $0x3e0] sm:$0xff]
    %v180 = vld [vmem:[#allocation2 + $0x3e8] sm:$0xff]
    %v181 = vld [vmem:[#allocation2 + $0x3f0] sm:$0xff]
    %v182 = vld [vmem:[#allocation2 + $0x3f8] sm:$0xff]
    %v183 = vld [vmem:[%s2] sm:$0x1]
    %v185 = vlaneseq
    %v186 = vshrl.u32 %v185, 7
    %v187 = vsub.s32 0, %v186
    %v188 = vrot.slane %v183, %v187
    %190 = vmatprep.subr.mxu0 0.0
    %191 = vmatpush1.msra.mxu0 %v70
    %192 = vmatprep.subr.mxu0 0.0
    %193 = vmatpush1.msra.mxu0 %v69
    %194 = vmatprep.subr.mxu0 0.0
    %195 = vmatpush1.msra.mxu0 %v68
    %196 = vmatprep.subr.mxu0 0.0
    %197 = vmatpush1.msra.mxu0 %v67
    %198 = vmatprep.subr.mxu0 0.0
    %199 = vmatpush1.msra.mxu0 %v66
    %200 = vmatprep.subr.mxu0 0.0
    %201 = vmatpush1.msra.mxu0 %v65
    %202 = vmatprep.subr.mxu0 0.0
    %203 = vmatpush1.msra.mxu0 %v64
    %204 = vmatprep.subr.mxu0 0.0
    %205 = vmatpush1.msra.mxu0 %v63
    %206 = vmatprep.subr.mxu0 0.0
    %207 = vmatpush1.msra.mxu0 %v62
    %208 = vmatprep.subr.mxu0 0.0
    %209 = vmatpush1.msra.mxu0 %v61
    %210 = vmatprep.subr.mxu0 0.0
    %211 = vmatpush1.msra.mxu0 %v60
    %212 = vmatprep.subr.mxu0 0.0
    %213 = vmatpush1.msra.mxu0 %v59
    %214 = vmatprep.subr.mxu0 0.0
    %215 = vmatpush1.msra.mxu0 %v58
    %216 = vmatprep.subr.mxu0 0.0
    %217 = vmatpush1.msra.mxu0 %v57
    %218 = vmatprep.subr.mxu0 0.0
    %219 = vmatpush1.msra.mxu0 %v56
    %220 = vmatprep.subr.mxu0 0.0
    %221 = vmatpush1.msra.mxu0 %v55
    %222 = vmatprep.subr.mxu0 0.0
    %223 = vmatpush2.msra.mxu0 %v86
    %224 = vmatprep.subr.mxu0 0.0
    %225 = vmatpush2.msra.mxu0 %v85
    %226 = vmatprep.subr.mxu0 0.0
    %227 = vmatpush2.msra.mxu0 %v84
    %228 = vmatprep.subr.mxu0 0.0
    %229 = vmatpush2.msra.mxu0 %v83
    %230 = vmatprep.subr.mxu0 0.0
    %231 = vmatpush2.msra.mxu0 %v82
    %232 = vmatprep.subr.mxu0 0.0
    %233 = vmatpush2.msra.mxu0 %v81
    %234 = vmatprep.subr.mxu0 0.0
    %235 = vmatpush2.msra.mxu0 %v80
    %236 = vmatprep.subr.mxu0 0.0
    %237 = vmatpush2.msra.mxu0 %v79
    %238 = vmatprep.subr.mxu0 0.0
    %239 = vmatpush2.msra.mxu0 %v78
    %240 = vmatprep.subr.mxu0 0.0
    %241 = vmatpush2.msra.mxu0 %v77
    %242 = vmatprep.subr.mxu0 0.0
    %243 = vmatpush2.msra.mxu0 %v76
    %244 = vmatprep.subr.mxu0 0.0
    %245 = vmatpush2.msra.mxu0 %v75
    %246 = vmatprep.subr.mxu0 0.0
    %247 = vmatpush2.msra.mxu0 %v74
    %248 = vmatprep.subr.mxu0 0.0
    %249 = vmatpush2.msra.mxu0 %v73
    %250 = vmatprep.subr.mxu0 0.0
    %251 = vmatpush2.msra.mxu0 %v72
    %252 = vmatprep.subr.mxu0 0.0
    %253 = vmatpush2.msra.mxu0 %v71
    %254 = vmatprep.mubr.f32.mxu0 %v48
    %255 = vmatmul.mubr.f32.gmra.mxu0 %v47
    %v256 = vpop.f32.mrf.mxu0
    %v257 = vadd.f32 %v188, %v256
    %v258 = vpop.f32.mrf.mxu0
    %259 = vdwg.mxu0
    %260 = vmatprep.subr.mxu0 0.0
    %261 = vmatpush1.msra.mxu0 %v102
    %262 = vmatprep.subr.mxu0 0.0
    %263 = vmatpush1.msra.mxu0 %v101
    %264 = vmatprep.subr.mxu0 0.0
    %265 = vmatpush1.msra.mxu0 %v100
    %266 = vmatprep.subr.mxu0 0.0
    %267 = vmatpush1.msra.mxu0 %v99
    %268 = vmatprep.subr.mxu0 0.0
    %269 = vmatpush1.msra.mxu0 %v98
    %270 = vmatprep.subr.mxu0 0.0
    %271 = vmatpush1.msra.mxu0 %v97
    %272 = vmatprep.subr.mxu0 0.0
    %273 = vmatpush1.msra.mxu0 %v96
    %274 = vmatprep.subr.mxu0 0.0
    %275 = vmatpush1.msra.mxu0 %v95
    %276 = vmatprep.subr.mxu0 0.0
    %277 = vmatpush1.msra.mxu0 %v94
    %278 = vmatprep.subr.mxu0 0.0
    %279 = vmatpush1.msra.mxu0 %v93
    %280 = vmatprep.subr.mxu0 0.0
    %281 = vmatpush1.msra.mxu0 %v92
    %282 = vmatprep.subr.mxu0 0.0
    %283 = vmatpush1.msra.mxu0 %v91
    %284 = vmatprep.subr.mxu0 0.0
    %285 = vmatpush1.msra.mxu0 %v90
    %286 = vmatprep.subr.mxu0 0.0
    %287 = vmatpush1.msra.mxu0 %v89
    %288 = vmatprep.subr.mxu0 0.0
    %289 = vmatpush1.msra.mxu0 %v88
    %290 = vmatprep.subr.mxu0 0.0
    %291 = vmatpush1.msra.mxu0 %v87
    %292 = vmatprep.subr.mxu0 0.0
    %293 = vmatpush2.msra.mxu0 %v118
    %294 = vmatprep.subr.mxu0 0.0
    %295 = vmatpush2.msra.mxu0 %v117
    %296 = vmatprep.subr.mxu0 0.0
    %297 = vmatpush2.msra.mxu0 %v116
    %298 = vmatprep.subr.mxu0 0.0
    %299 = vmatpush2.msra.mxu0 %v115
    %300 = vmatprep.subr.mxu0 0.0
    %301 = vmatpush2.msra.mxu0 %v114
    %302 = vmatprep.subr.mxu0 0.0
    %303 = vmatpush2.msra.mxu0 %v113
    %304 = vmatprep.subr.mxu0 0.0
    %305 = vmatpush2.msra.mxu0 %v112
    %306 = vmatprep.subr.mxu0 0.0
    %307 = vmatpush2.msra.mxu0 %v111
    %308 = vmatprep.subr.mxu0 0.0
    %309 = vmatpush2.msra.mxu0 %v110
    %310 = vmatprep.subr.mxu0 0.0
    %311 = vmatpush2.msra.mxu0 %v109
    %312 = vmatprep.subr.mxu0 0.0
    %313 = vmatpush2.msra.mxu0 %v108
    %314 = vmatprep.subr.mxu0 0.0
    %315 = vmatpush2.msra.mxu0 %v107
    %316 = vmatprep.subr.mxu0 0.0
    %317 = vmatpush2.msra.mxu0 %v106
    %318 = vmatprep.subr.mxu0 0.0
    %319 = vmatpush2.msra.mxu0 %v105
    %320 = vmatprep.subr.mxu0 0.0
    %321 = vmatpush2.msra.mxu0 %v104
    %322 = vmatprep.subr.mxu0 0.0
    %323 = vmatpush2.msra.mxu0 %v103
    %324 = vmatprep.mubr.f32.mxu0 %v50
    %325 = vmatmul.mubr.f32.gmra.mxu0 %v49
    %v326 = vpop.f32.mrf.mxu0
    %v327 = vadd.f32 %v257, %v326
    %v328 = vpop.f32.mrf.mxu0
    %329 = vdwg.mxu0
    %330 = vmatprep.subr.mxu0 0.0
    %331 = vmatpush1.msra.mxu0 %v134
    %332 = vmatprep.subr.mxu0 0.0
    %333 = vmatpush1.msra.mxu0 %v133
    %334 = vmatprep.subr.mxu0 0.0
    %335 = vmatpush1.msra.mxu0 %v132
    %336 = vmatprep.subr.mxu0 0.0
    %337 = vmatpush1.msra.mxu0 %v131
    %338 = vmatprep.subr.mxu0 0.0
    %339 = vmatpush1.msra.mxu0 %v130
    %340 = vmatprep.subr.mxu0 0.0
    %341 = vmatpush1.msra.mxu0 %v129
    %342 = vmatprep.subr.mxu0 0.0
    %343 = vmatpush1.msra.mxu0 %v128
    %344 = vmatprep.subr.mxu0 0.0
    %345 = vmatpush1.msra.mxu0 %v127
    %346 = vmatprep.subr.mxu0 0.0
    %347 = vmatpush1.msra.mxu0 %v126
    %348 = vmatprep.subr.mxu0 0.0
    %349 = vmatpush1.msra.mxu0 %v125
    %350 = vmatprep.subr.mxu0 0.0
    %351 = vmatpush1.msra.mxu0 %v124
    %352 = vmatprep.subr.mxu0 0.0
    %353 = vmatpush1.msra.mxu0 %v123
    %354 = vmatprep.subr.mxu0 0.0
    %355 = vmatpush1.msra.mxu0 %v122
    %356 = vmatprep.subr.mxu0 0.0
    %357 = vmatpush1.msra.mxu0 %v121
    %358 = vmatprep.subr.mxu0 0.0
    %359 = vmatpush1.msra.mxu0 %v120
    %360 = vmatprep.subr.mxu0 0.0
    %361 = vmatpush1.msra.mxu0 %v119
    %362 = vmatprep.subr.mxu0 0.0
    %363 = vmatpush2.msra.mxu0 %v150
    %364 = vmatprep.subr.mxu0 0.0
    %365 = vmatpush2.msra.mxu0 %v149
    %366 = vmatprep.subr.mxu0 0.0
    %367 = vmatpush2.msra.mxu0 %v148
    %368 = vmatprep.subr.mxu0 0.0
    %369 = vmatpush2.msra.mxu0 %v147
    %370 = vmatprep.subr.mxu0 0.0
    %371 = vmatpush2.msra.mxu0 %v146
    %372 = vmatprep.subr.mxu0 0.0
    %373 = vmatpush2.msra.mxu0 %v145
    %374 = vmatprep.subr.mxu0 0.0
    %375 = vmatpush2.msra.mxu0 %v144
    %376 = vmatprep.subr.mxu0 0.0
    %377 = vmatpush2.msra.mxu0 %v143
    %378 = vmatprep.subr.mxu0 0.0
    %379 = vmatpush2.msra.mxu0 %v142
    %380 = vmatprep.subr.mxu0 0.0
    %381 = vmatpush2.msra.mxu0 %v141
    %382 = vmatprep.subr.mxu0 0.0
    %383 = vmatpush2.msra.mxu0 %v140
    %384 = vmatprep.subr.mxu0 0.0
    %385 = vmatpush2.msra.mxu0 %v139
    %386 = vmatprep.subr.mxu0 0.0
    %387 = vmatpush2.msra.mxu0 %v138
    %388 = vmatprep.subr.mxu0 0.0
    %389 = vmatpush2.msra.mxu0 %v137
    %390 = vmatprep.subr.mxu0 0.0
    %391 = vmatpush2.msra.mxu0 %v136
    %392 = vmatprep.subr.mxu0 0.0
    %393 = vmatpush2.msra.mxu0 %v135
    %394 = vmatprep.mubr.f32.mxu0 %v52
    %395 = vmatmul.mubr.f32.gmra.mxu0 %v51
    %v396 = vpop.f32.mrf.mxu0
    %v397 = vadd.f32 %v327, %v396
    %v398 = vpop.f32.mrf.mxu0
    %399 = vdwg.mxu0
    %400 = vmatprep.subr.mxu0 0.0
    %401 = vmatpush1.msra.mxu0 %v166
    %402 = vmatprep.subr.mxu0 0.0
    %403 = vmatpush1.msra.mxu0 %v165
    %404 = vmatprep.subr.mxu0 0.0
    %405 = vmatpush1.msra.mxu0 %v164
    %406 = vmatprep.subr.mxu0 0.0
    %407 = vmatpush1.msra.mxu0 %v163
    %408 = vmatprep.subr.mxu0 0.0
    %409 = vmatpush1.msra.mxu0 %v162
    %410 = vmatprep.subr.mxu0 0.0
    %411 = vmatpush1.msra.mxu0 %v161
    %412 = vmatprep.subr.mxu0 0.0
    %413 = vmatpush1.msra.mxu0 %v160
    %414 = vmatprep.subr.mxu0 0.0
    %415 = vmatpush1.msra.mxu0 %v159
    %416 = vmatprep.subr.mxu0 0.0
    %417 = vmatpush1.msra.mxu0 %v158
    %418 = vmatprep.subr.mxu0 0.0
    %419 = vmatpush1.msra.mxu0 %v157
    %420 = vmatprep.subr.mxu0 0.0
    %421 = vmatpush1.msra.mxu0 %v156
    %422 = vmatprep.subr.mxu0 0.0
    %423 = vmatpush1.msra.mxu0 %v155
    %424 = vmatprep.subr.mxu0 0.0
    %425 = vmatpush1.msra.mxu0 %v154
    %426 = vmatprep.subr.mxu0 0.0
    %427 = vmatpush1.msra.mxu0 %v153
    %428 = vmatprep.subr.mxu0 0.0
    %429 = vmatpush1.msra.mxu0 %v152
    %430 = vmatprep.subr.mxu0 0.0
    %431 = vmatpush1.msra.mxu0 %v151
    %432 = vmatprep.subr.mxu0 0.0
    %433 = vmatpush2.msra.mxu0 %v182
    %434 = vmatprep.subr.mxu0 0.0
    %435 = vmatpush2.msra.mxu0 %v181
    %436 = vmatprep.subr.mxu0 0.0
    %437 = vmatpush2.msra.mxu0 %v180
    %438 = vmatprep.subr.mxu0 0.0
    %439 = vmatpush2.msra.mxu0 %v179
    %440 = vmatprep.subr.mxu0 0.0
    %441 = vmatpush2.msra.mxu0 %v178
    %442 = vmatprep.subr.mxu0 0.0
    %443 = vmatpush2.msra.mxu0 %v177
    %444 = vmatprep.subr.mxu0 0.0
    %445 = vmatpush2.msra.mxu0 %v176
    %446 = vmatprep.subr.mxu0 0.0
    %447 = vmatpush2.msra.mxu0 %v175
    %448 = vmatprep.subr.mxu0 0.0
    %449 = vmatpush2.msra.mxu0 %v174
    %450 = vmatprep.subr.mxu0 0.0
    %451 = vmatpush2.msra.mxu0 %v173
    %452 = vmatprep.subr.mxu0 0.0
    %453 = vmatpush2.msra.mxu0 %v172
    %454 = vmatprep.subr.mxu0 0.0
    %455 = vmatpush2.msra.mxu0 %v171
    %456 = vmatprep.subr.mxu0 0.0
    %457 = vmatpush2.msra.mxu0 %v170
    %458 = vmatprep.subr.mxu0 0.0
    %459 = vmatpush2.msra.mxu0 %v169
    %460 = vmatprep.subr.mxu0 0.0
    %461 = vmatpush2.msra.mxu0 %v168
    %462 = vmatprep.subr.mxu0 0.0
    %463 = vmatpush2.msra.mxu0 %v167
    %464 = vmatprep.mubr.f32.mxu0 %v54
    %465 = vmatmul.mubr.f32.gmra.mxu0 %v53
    %v466 = vpop.f32.mrf.mxu0
    %v467 = vadd.f32 %v397, %v466
    %v468 = vpop.f32.mrf.mxu0
    %469 = vdwg.mxu0
    %470 = vmax.xlane.f32.xlu0 %v467
    %v471 = vpop.xlane.xlu0 %470
    %v472 = vsub.f32 %v467, %v471
    %v473 = vmul.f32 %v472, 1.442695
    %v474 = vpow.pop %v473
    %475 = vadd.xlane.f32.xlu0 %v474
    %v476 = vpop.xlane.xlu0 %475
    %v477 = vlog2.pop %v476
    %v478 = vmul.f32 %v477, 0.6931472
    %v479 = vsub.f32 %v472, %v478
    %v480 = vld [vmem:[%s3] sm:$0xff]
    %v481 = vld [vmem:[%s3 + $0x8] sm:$0xff]
    %v482 = vld [vmem:[%s3 + $0x10] sm:$0xff]
    %v483 = vld [vmem:[%s3 + $0x18] sm:$0xff]
    %v484 = vld [vmem:[%s3 + $0x20] sm:$0xff]
    %v485 = vld [vmem:[%s3 + $0x28] sm:$0xff]
    %v486 = vld [vmem:[%s3 + $0x30] sm:$0xff]
    %v487 = vld [vmem:[%s3 + $0x38] sm:$0xff]
    %v488 = vld [vmem:[%s3 + $0x40] sm:$0xff]
    %v489 = vld [vmem:[%s3 + $0x48] sm:$0xff]
    %v490 = vld [vmem:[%s3 + $0x50] sm:$0xff]
    %v491 = vld [vmem:[%s3 + $0x58] sm:$0xff]
    %v492 = vld [vmem:[%s3 + $0x60] sm:$0xff]
    %v493 = vld [vmem:[%s3 + $0x68] sm:$0xff]
    %v494 = vld [vmem:[%s3 + $0x70] sm:$0xff]
    %v495 = vld [vmem:[%s3 + $0x78] sm:$0xff]
    %v496 = vld [vmem:[%s4] sm:$0x1]
    %v498 = vlaneseq
    %v499 = vshrl.u32 %v498, 7
    %v500 = vsub.s32 0, %v499
    %v501 = vrot.slane %v496, %v500
    %503 = vmatprep.subr.mxu0 0.0
    %504 = vmatpush1.msra.mxu0 %v495
    %505 = vmatprep.subr.mxu0 0.0
    %506 = vmatpush1.msra.mxu0 %v494
    %507 = vmatprep.subr.mxu0 0.0
    %508 = vmatpush1.msra.mxu0 %v493
    %509 = vmatprep.subr.mxu0 0.0
    %510 = vmatpush1.msra.mxu0 %v492
    %511 = vmatprep.subr.mxu0 0.0
    %512 = vmatpush1.msra.mxu0 %v491
    %513 = vmatprep.subr.mxu0 0.0
    %514 = vmatpush1.msra.mxu0 %v490
    %515 = vmatprep.subr.mxu0 0.0
    %516 = vmatpush1.msra.mxu0 %v489
    %517 = vmatprep.subr.mxu0 0.0
    %518 = vmatpush1.msra.mxu0 %v488
    %519 = vmatprep.subr.mxu0 0.0
    %520 = vmatpush1.msra.mxu0 %v487
    %521 = vmatprep.subr.mxu0 0.0
    %522 = vmatpush1.msra.mxu0 %v486
    %523 = vmatprep.subr.mxu0 0.0
    %524 = vmatpush1.msra.mxu0 %v485
    %525 = vmatprep.subr.mxu0 0.0
    %526 = vmatpush1.msra.mxu0 %v484
    %527 = vmatprep.subr.mxu0 0.0
    %528 = vmatpush1.msra.mxu0 %v483
    %529 = vmatprep.subr.mxu0 0.0
    %530 = vmatpush1.msra.mxu0 %v482
    %531 = vmatprep.subr.mxu0 0.0
    %532 = vmatpush1.msra.mxu0 %v481
    %533 = vmatprep.subr.mxu0 0.0
    %534 = vmatpush1.msra.mxu0 %v480
    %535 = vmatprep.subr.mxu0 0.0
    %536 = vmatpush2.msra.mxu0 0.0
    %537 = vmatprep.subr.mxu0 0.0
    %538 = vmatpush2.msra.mxu0 0.0
    %539 = vmatprep.subr.mxu0 0.0
    %540 = vmatpush2.msra.mxu0 0.0
    %541 = vmatprep.subr.mxu0 0.0
    %542 = vmatpush2.msra.mxu0 0.0
    %543 = vmatprep.subr.mxu0 0.0
    %544 = vmatpush2.msra.mxu0 0.0
    %545 = vmatprep.subr.mxu0 0.0
    %546 = vmatpush2.msra.mxu0 0.0
    %547 = vmatprep.subr.mxu0 0.0
    %548 = vmatpush2.msra.mxu0 0.0
    %549 = vmatprep.subr.mxu0 0.0
    %550 = vmatpush2.msra.mxu0 0.0
    %551 = vmatprep.subr.mxu0 0.0
    %552 = vmatpush2.msra.mxu0 0.0
    %553 = vmatprep.subr.mxu0 0.0
    %554 = vmatpush2.msra.mxu0 0.0
    %555 = vmatprep.subr.mxu0 0.0
    %556 = vmatpush2.msra.mxu0 0.0
    %557 = vmatprep.subr.mxu0 0.0
    %558 = vmatpush2.msra.mxu0 0.0
    %559 = vmatprep.subr.mxu0 0.0
    %560 = vmatpush2.msra.mxu0 0.0
    %561 = vmatprep.subr.mxu0 0.0
    %562 = vmatpush2.msra.mxu0 0.0
    %563 = vmatprep.subr.mxu0 0.0
    %564 = vmatpush2.msra.mxu0 0.0
    %565 = vmatprep.subr.mxu0 0.0
    %566 = vmatpush2.msra.mxu0 0.0
    %567 = vmatprep.mubr.f32.mxu0 0.0
    %568 = vmatmul.mubr.f32.gmra.mxu0 %v479
    %v569 = vpop.f32.mrf.mxu0
    %v570 = vadd.f32 %v501, %v569
    %v571 = vpop.f32.mrf.mxu0
    %572 = vdwg.mxu0
    %vm573 = vcmask 523264
    %v574 = vsel %vm573, %v570, -inf
    %575 = vmax.xlane.f32.xlu0 %v574
    %v576 = vpop.xlane.xlu0 %575
    %v577 = vsub.f32 %v570, %v576
    %v578 = vmul.f32 %v577, 1.442695
    %v579 = vpow.pop %v578
    %v580 = vsel %vm573, %v579, 0.0
    %581 = vadd.xlane.f32.xlu0 %v580
    %v582 = vpop.xlane.xlu0 %581
    %v583 = vlog2.pop %v582
    %v584 = vmul.f32 %v583, 0.6931472
    %v585 = vsub.f32 %v577, %v584
    %v586 = vld [vmem:[%s5] sm:$0xff]
    %v587 = vld [vmem:[%s5 + $0x8] sm:$0xff]
    %v588 = vld [vmem:[%s5 + $0x10] sm:$0xff]
    %v589 = vld [vmem:[%s5 + $0x18] sm:$0xff]
    %v590 = vld [vmem:[%s5 + $0x20] sm:$0xff]
    %v591 = vld [vmem:[%s5 + $0x28] sm:$0xff]
    %v592 = vld [vmem:[%s5 + $0x30] sm:$0xff]
    %v593 = vld [vmem:[%s5 + $0x38] sm:$0xff]
    %v594 = vld [vmem:[%s6] sm:$0x1]
    %v596 = vlaneseq
    %v597 = vshrl.u32 %v596, 7
    %v598 = vsub.s32 0, %v597
    %v599 = vrot.slane %v594, %v598
    %v602 = vsel %vm573, %v585, 0
    %604 = vmatprep.subr.mxu0 0.0
    %605 = vmatpush1.msra.mxu0 0.0
    %606 = vmatprep.subr.mxu0 0.0
    %607 = vmatpush1.msra.mxu0 0.0
    %608 = vmatprep.subr.mxu0 0.0
    %609 = vmatpush1.msra.mxu0 0.0
    %610 = vmatprep.subr.mxu0 0.0
    %611 = vmatpush1.msra.mxu0 0.0
    %612 = vmatprep.subr.mxu0 0.0
    %613 = vmatpush1.msra.mxu0 0.0
    %614 = vmatprep.subr.mxu0 0.0
    %615 = vmatpush1.msra.mxu0 0.0
    %616 = vmatprep.subr.mxu0 0.0
    %617 = vmatpush1.msra.mxu0 0.0
    %618 = vmatprep.subr.mxu0 0.0
    %619 = vmatpush1.msra.mxu0 0.0
    %620 = vmatprep.subr.mxu0 0.0
    %621 = vmatpush1.msra.mxu0 %v593
    %622 = vmatprep.subr.mxu0 0.0
    %623 = vmatpush1.msra.mxu0 %v592
    %624 = vmatprep.subr.mxu0 0.0
    %625 = vmatpush1.msra.mxu0 %v591
    %626 = vmatprep.subr.mxu0 0.0
    %627 = vmatpush1.msra.mxu0 %v590
    %628 = vmatprep.subr.mxu0 0.0
    %629 = vmatpush1.msra.mxu0 %v589
    %630 = vmatprep.subr.mxu0 0.0
    %631 = vmatpush1.msra.mxu0 %v588
    %632 = vmatprep.subr.mxu0 0.0
    %633 = vmatpush1.msra.mxu0 %v587
    %634 = vmatprep.subr.mxu0 0.0
    %635 = vmatpush1.msra.mxu0 %v586
    %636 = vmatprep.subr.mxu0 0.0
    %637 = vmatpush2.msra.mxu0 0.0
    %638 = vmatprep.subr.mxu0 0.0
    %639 = vmatpush2.msra.mxu0 0.0
    %640 = vmatprep.subr.mxu0 0.0
    %641 = vmatpush2.msra.mxu0 0.0
    %642 = vmatprep.subr.mxu0 0.0
    %643 = vmatpush2.msra.mxu0 0.0
    %644 = vmatprep.subr.mxu0 0.0
    %645 = vmatpush2.msra.mxu0 0.0
    %646 = vmatprep.subr.mxu0 0.0
    %647 = vmatpush2.msra.mxu0 0.0
    %648 = vmatprep.subr.mxu0 0.0
    %649 = vmatpush2.msra.mxu0 0.0
    %650 = vmatprep.subr.mxu0 0.0
    %651 = vmatpush2.msra.mxu0 0.0
    %652 = vmatprep.subr.mxu0 0.0
    %653 = vmatpush2.msra.mxu0 0.0
    %654 = vmatprep.subr.mxu0 0.0
    %655 = vmatpush2.msra.mxu0 0.0
    %656 = vmatprep.subr.mxu0 0.0
    %657 = vmatpush2.msra.mxu0 0.0
    %658 = vmatprep.subr.mxu0 0.0
    %659 = vmatpush2.msra.mxu0 0.0
    %660 = vmatprep.subr.mxu0 0.0
    %661 = vmatpush2.msra.mxu0 0.0
    %662 = vmatprep.subr.mxu0 0.0
    %663 = vmatpush2.msra.mxu0 0.0
    %664 = vmatprep.subr.mxu0 0.0
    %665 = vmatpush2.msra.mxu0 0.0
    %666 = vmatprep.subr.mxu0 0.0
    %667 = vmatpush2.msra.mxu0 0.0
    %668 = vmatprep.mubr.f32.mxu0 0.0
    %669 = vmatmul.mubr.f32.gmra.mxu0 %v602
    %v670 = vpop.f32.mrf.mxu0
    %v671 = vadd.f32 %v599, %v670
    %v672 = vpop.f32.mrf.mxu0
    %673 = vdwg.mxu0
    %vm674 = vcmask 261120
    %v675 = vsel %vm674, %v671, -inf
    %676 = vmax.xlane.f32.xlu0 %v675
    %v677 = vpop.xlane.xlu0 %676
    %v678 = vsub.f32 %v671, %v677
    %v679 = vmul.f32 %v678, 1.442695
    %v680 = vpow.pop %v679
    %v681 = vsel %vm674, %v680, 0.0
    %682 = vadd.xlane.f32.xlu0 %v681
    %v683 = vpop.xlane.xlu0 %682
    %v684 = vlog2.pop %v683
    %v685 = vmul.f32 %v684, 0.6931472
    %v686 = vsub.f32 %v678, %v685
    %v687 = vld [vmem:[%s7] sm:$0xff]
    %v688 = vld [vmem:[%s7 + $0x8] sm:$0xff]
    %v689 = vld [vmem:[%s7 + $0x10] sm:$0xff]
    %v690 = vld [vmem:[%s7 + $0x18] sm:$0xff]
    %v691 = vld [vmem:[%s8] sm:$0x1]
    %v693 = vlaneseq
    %v694 = vshrl.u32 %v693, 7
    %v695 = vsub.s32 0, %v694
    %v696 = vrot.slane %v691, %v695
    %v699 = vsel %vm674, %v686, 0
    %701 = vmatprep.subr.mxu0 0.0
    %702 = vmatpush1.msra.mxu0 0.0
    %703 = vmatprep.subr.mxu0 0.0
    %704 = vmatpush1.msra.mxu0 0.0
    %705 = vmatprep.subr.mxu0 0.0
    %706 = vmatpush1.msra.mxu0 0.0
    %707 = vmatprep.subr.mxu0 0.0
    %708 = vmatpush1.msra.mxu0 0.0
    %709 = vmatprep.subr.mxu0 0.0
    %710 = vmatpush1.msra.mxu0 0.0
    %711 = vmatprep.subr.mxu0 0.0
    %712 = vmatpush1.msra.mxu0 0.0
    %713 = vmatprep.subr.mxu0 0.0
    %714 = vmatpush1.msra.mxu0 0.0
    %715 = vmatprep.subr.mxu0 0.0
    %716 = vmatpush1.msra.mxu0 0.0
    %717 = vmatprep.subr.mxu0 0.0
    %718 = vmatpush1.msra.mxu0 0.0
    %719 = vmatprep.subr.mxu0 0.0
    %720 = vmatpush1.msra.mxu0 0.0
    %721 = vmatprep.subr.mxu0 0.0
    %722 = vmatpush1.msra.mxu0 0.0
    %723 = vmatprep.subr.mxu0 0.0
    %724 = vmatpush1.msra.mxu0 0.0
    %725 = vmatprep.subr.mxu0 0.0
    %726 = vmatpush1.msra.mxu0 %v690
    %727 = vmatprep.subr.mxu0 0.0
    %728 = vmatpush1.msra.mxu0 %v689
    %729 = vmatprep.subr.mxu0 0.0
    %730 = vmatpush1.msra.mxu0 %v688
    %731 = vmatprep.subr.mxu0 0.0
    %732 = vmatpush1.msra.mxu0 %v687
    %733 = vmatprep.subr.mxu0 0.0
    %734 = vmatpush2.msra.mxu0 0.0
    %735 = vmatprep.subr.mxu0 0.0
    %736 = vmatpush2.msra.mxu0 0.0
    %737 = vmatprep.subr.mxu0 0.0
    %738 = vmatpush2.msra.mxu0 0.0
    %739 = vmatprep.subr.mxu0 0.0
    %740 = vmatpush2.msra.mxu0 0.0
    %741 = vmatprep.subr.mxu0 0.0
    %742 = vmatpush2.msra.mxu0 0.0
    %743 = vmatprep.subr.mxu0 0.0
    %744 = vmatpush2.msra.mxu0 0.0
    %745 = vmatprep.subr.mxu0 0.0
    %746 = vmatpush2.msra.mxu0 0.0
    %747 = vmatprep.subr.mxu0 0.0
    %748 = vmatpush2.msra.mxu0 0.0
    %749 = vmatprep.subr.mxu0 0.0
    %750 = vmatpush2.msra.mxu0 0.0
    %751 = vmatprep.subr.mxu0 0.0
    %752 = vmatpush2.msra.mxu0 0.0
    %753 = vmatprep.subr.mxu0 0.0
    %754 = vmatpush2.msra.mxu0 0.0
    %755 = vmatprep.subr.mxu0 0.0
    %756 = vmatpush2.msra.mxu0 0.0
    %757 = vmatprep.subr.mxu0 0.0
    %758 = vmatpush2.msra.mxu0 0.0
    %759 = vmatprep.subr.mxu0 0.0
    %760 = vmatpush2.msra.mxu0 0.0
    %761 = vmatprep.subr.mxu0 0.0
    %762 = vmatpush2.msra.mxu0 0.0
    %763 = vmatprep.subr.mxu0 0.0
    %764 = vmatpush2.msra.mxu0 0.0
    %765 = vmatprep.mubr.f32.mxu0 0.0
    %766 = vmatmul.mubr.f32.gmra.mxu0 %v699
    %v767 = vpop.f32.mrf.mxu0
    %v768 = vadd.f32 %v696, %v767
    %v769 = vpop.f32.mrf.mxu0
    %770 = vdwg.mxu0
    %771 = vmax.xlane.f32.xlu0 %v768
    %v772 = vpop.xlane.xlu0 %771
    %v773 = vsub.f32 %v768, %v772
    %v774 = vmul.f32 %v773, 1.442695
    %v775 = vpow.pop %v774
    %776 = vadd.xlane.f32.xlu0 %v775
    %v777 = vpop.xlane.xlu0 %776
    %v778 = vlog2.pop %v777
    %v779 = vmul.f32 %v778, 0.6931472
    %v780 = vsub.f32 %v773, %v779
    %781 = vst [vmem:[#allocation5] sm:$0xff] %v780
    // Predicated region
    $region42: #{tpu_custom_call.1} parent=1 // pred_check
      _
    $region43: #{tpu_custom_call.1} parent=1 // pred_check_branch
      %783 = sbr.rel (0) target = $region45
    $region44: #{tpu_custom_call.1} parent=1 // pred_region
      %s785 = ssub.s32 128, 128
      %786 = vsyncadd [#allocation4], %s785
      %s788 = sshll.u32 [#allocation5], 4
      %s789 = int_to_ptr.vmem [resolvable:$true] %s788
      %791 = dma.vmem_to_hbm [thread:$0]  %s789, 128, %s9, [#allocation4]
    $region45: #{tpu_custom_call.1} parent=1 // pred_fallthru
      _
    // Predicated region
    $region46: #{tpu_custom_call.1} parent=1 // pred_check
      _
    $region47: #{tpu_custom_call.1} parent=1 // pred_check_branch
      %793 = sbr.rel (0) target = $region49
    $region48: #{tpu_custom_call.1} parent=1 // pred_region
      %794 = dma.done [#allocation4], 128
    $region49: #{tpu_custom_call.1} parent=1 // pred_fallthru
      _
    %795 = vsyncpa [#allocation3], 1
    %796 = vsyncpa [#allocation4], 1

</llo_original>
